<compile_context>
chip_gen: v7x
topology: tpu7x:2x2x1
jax: 0.10.0
libtpu: 0.0.40
codegen_flags: <defaults>
</compile_context>

<pallas_src>
import functools

import jax
import jax.numpy as jnp
from jax.experimental import pallas as pl
from jax.experimental.pallas import tpu as pltpu


def _round_up(x, m):
    return ((x + m - 1) // m) * m


def _pick_block(n_batch, block_n):
    """Batch tile: >=2 grid steps when possible (v7x megacore), capped at block_n."""
    n8 = _round_up(max(n_batch, 1), 8)
    if n8 <= 8:
        return 8
    half = _round_up(n8 // 2, 8)
    return int(max(8, min(block_n, half)))


def encoder_kernel(ids_ref, self_ref, wgt_ref, feats_ref, wcat_ref,
                   out_ref, comb_ref, *, num_sample):
    """One batch tile: gather+weighted-mean neighbors, fused projection, ReLU.

    ids_ref : SMEM int32 [n_pad*S]   (scalar prefetch) sampled neighbor ids
    self_ref: VMEM f32   [bn, F]     self features
    wgt_ref : VMEM f32   [bn, S]     per-sample weights (1/deg, 0 for padding)
    feats_ref: VMEM f32  [V, F]      full node feature table (grid-invariant)
    wcat_ref: VMEM bf16  [2F, E_pad] pre-concatenated W^T (grid-invariant)
    out_ref : VMEM       [bn, E_pad] relu(combined @ W^T)
    comb_ref: VMEM f32   [bn, 2F]    scratch holding [self | neigh]
    """
    i = pl.program_id(0)
    bn = comb_ref.shape[0]
    feat_dim = feats_ref.shape[1]

    # Self half of the combined activation buffer (vectorized copy).
    comb_ref[:, :feat_dim] = self_ref[...]

    # Gather + weighted mean of the sampled neighbor rows -> other half.
    def gather_one(r, carry):
        base = (i * bn + r) * num_sample
        w_row = wgt_ref[pl.ds(r, 1), :]                       # (1, S) f32
        acc = jnp.zeros((1, feat_dim), jnp.float32)
        for s in range(num_sample):                           # static unroll
            idx = ids_ref[base + s]                           # SMEM scalar
            acc = acc + w_row[:, s:s + 1] * feats_ref[pl.ds(idx, 1), :]
        comb_ref[pl.ds(r, 1), feat_dim:] = acc
        return carry

    jax.lax.fori_loop(0, bn, gather_one, 0)

    # Single fused projection over K = 2F (bf16 MXU operands, f32 accumulate),
    # ReLU in f32, lane-dense store.
    out = jnp.dot(comb_ref[...].astype(wcat_ref.dtype), wcat_ref[...],
                  preferred_element_type=jnp.float32)
    out_ref[...] = jnp.maximum(out, 0.0).astype(out_ref.dtype)


def prepare_encoder_params(weight, *, compute_dtype=jnp.bfloat16):
    """One-time parameter layout prep (hoisted out of the per-call path).

    weight: [E, 2F]  ->  W^T padded to [2F, E_pad] in bf16 (lane-dense output).
    """
    embed_dim, two_f = weight.shape
    e_pad = _round_up(embed_dim, 128)
    w_t = jnp.zeros((two_f, e_pad), compute_dtype)
    w_t = w_t.at[:, :embed_dim].set(weight.T.astype(compute_dtype))
    return w_t


def encoder_forward(nbr_ids, nbr_wgts, feats, self_fts, w_t, embed_dim, *,
                    block_n=256, out_dtype=jnp.float32):
    """Returns relu(weight @ cat([self, neigh_mean], 1).T) with shape [E, N]."""
    n_batch, num_sample = nbr_ids.shape
    n_nodes, feat_dim = feats.shape
    e_pad = w_t.shape[1]

    bn = _pick_block(n_batch, block_n)
    n_pad = _round_up(n_batch, bn)
    if n_pad != n_batch:
        pad = n_pad - n_batch
        self_fts = jnp.pad(self_fts, ((0, pad), (0, 0)))
        nbr_ids = jnp.pad(nbr_ids, ((0, pad), (0, 0)))      # pads with id 0
        nbr_wgts = jnp.pad(nbr_wgts, ((0, pad), (0, 0)))    # pads with weight 0

    ids_flat = nbr_ids.reshape(-1).astype(jnp.int32)
    wgts = nbr_wgts.astype(jnp.float32)
    self_fts = self_fts.astype(jnp.float32)
    feats = feats.astype(jnp.float32)

    grid = (n_pad // bn,)
    out_bytes = jnp.dtype(out_dtype).itemsize
    flops = 2 * n_pad * (2 * feat_dim) * e_pad + 2 * n_pad * num_sample * feat_dim
    bytes_accessed = (feats.size * 4 + self_fts.size * 4 + wgts.size * 4
                      + ids_flat.size * 4 + w_t.size * 2 + n_pad * e_pad * out_bytes)

    kernel = functools.partial(encoder_kernel, num_sample=num_sample)

    out_t = pl.pallas_call(
        kernel,
        out_shape=jax.ShapeDtypeStruct((n_pad, e_pad), out_dtype),
        grid_spec=pltpu.PrefetchScalarGridSpec(
            num_scalar_prefetch=1,
            grid=grid,
            in_specs=[
                pl.BlockSpec((bn, feat_dim), lambda i, ids: (i, 0)),          # self
                pl.BlockSpec((bn, num_sample), lambda i, ids: (i, 0)),        # weights
                pl.BlockSpec((n_nodes, feat_dim), lambda i, ids: (0, 0)),     # feats (invariant)
                pl.BlockSpec((2 * feat_dim, e_pad), lambda i, ids: (0, 0)),   # W^T (invariant)
            ],
            out_specs=pl.BlockSpec((bn, e_pad), lambda i, ids: (i, 0)),
            scratch_shapes=[pltpu.VMEM((bn, 2 * feat_dim), jnp.float32)],
        ),
        compiler_params=pltpu.CompilerParams(
            dimension_semantics=("parallel",),
            vmem_limit_bytes=32 * 1024 * 1024),
        cost_estimate=pl.CostEstimate(flops=flops, transcendentals=0,
                                      bytes_accessed=bytes_accessed),
    )(ids_flat, self_fts, wgts, feats, w_t)

    # Single transpose + de-pad in the wrapper to match torch's [E, N].
    return out_t[:n_batch, :embed_dim].T


def reference_forward(nbr_ids, nbr_wgts, feats, self_fts, weight):
    gathered = jnp.take(feats, nbr_ids, axis=0)               # [N, S, F]
    neigh = jnp.einsum('ns,nsf->nf', nbr_wgts, gathered)      # weighted mean
    combined = jnp.concatenate([self_fts, neigh], axis=1)     # [N, 2F]
    return jnp.maximum(weight @ combined.T, 0.0)               # [E, N]


if __name__ == "__main__":
    # ---- deterministic synthetic setup -------------------------------------
    key = jax.random.PRNGKey(0)
    k_feat, k_w, k_nodes, k_deg, k_nbr = jax.random.split(key, 5)

    num_nodes = 64      # node-feature table size (V)
    feat_dim = 16       # F
    embed_dim = 32      # E
    batch = 8           # nodes per forward call (N)
    num_sample = 10     # sampled neighbors per node (S)

    # Node feature table (the `features` nn.Embedding weights).
    feats = jax.random.normal(k_feat, (num_nodes, feat_dim), dtype=jnp.float32)

    # Encoder weight [E, 2F], xavier-uniform init (non-gcn branch).
    fan_in, fan_out = 2 * feat_dim, embed_dim
    bound = (6.0 / (fan_in + fan_out)) ** 0.5
    weight = jax.random.uniform(k_w, (embed_dim, 2 * feat_dim),
                                minval=-bound, maxval=bound, dtype=jnp.float32)

    # Batch of node ids; embedding lookup for self-features (host/JAX glue,
    # same as the module's CPU nn.Embedding path).
    nodes = jax.random.randint(k_nodes, (batch,), 0, num_nodes)
    self_fts = jnp.take(feats, nodes, axis=0)

    # Sampled neighbor-id table + exact f32 mean weights (1/deg, 0 for padding)
    # — the output of the aggregator's host-side neighbor sampling.
    deg = jax.random.randint(k_deg, (batch,), 1, num_sample + 1)
    nbr_raw = jax.random.randint(k_nbr, (batch, num_sample), 0, num_nodes)
    valid = jnp.arange(num_sample)[None, :] < deg[:, None]
    nbr_ids = jnp.where(valid, nbr_raw, 0).astype(jnp.int32)
    nbr_wgts = jnp.where(valid, 1.0 / deg[:, None].astype(jnp.float32),
                         0.0).astype(jnp.float32)

    # One-time parameter layout prep (hoisted out of the forward path).
    w_t = prepare_encoder_params(weight)

    # ---- run kernel ---------------------------------------------------------
    out = encoder_forward(nbr_ids, nbr_wgts, feats, self_fts, w_t, embed_dim)
    out = jax.block_until_ready(out)

    ref = reference_forward(nbr_ids, nbr_wgts, feats, self_fts, weight)
    assert out.shape == (embed_dim, batch), out.shape
    # Aggregation is exact f32; only the projection uses bf16 MXU operands.
    assert jnp.allclose(out, ref, atol=5e-2, rtol=5e-2), "mismatch vs reference"

    print("KERNEL_OK")
</pallas_src>

<mosaic_0001>
module attributes {stable_mosaic.version = 11 : i64} {
  func.func @encoder_kernel(%arg0: i32, %arg1: memref<80xi32, #tpu.memory_space<smem>>, %arg2: memref<8x16xf32, #tpu.memory_space<vmem>>, %arg3: memref<8x10xf32, #tpu.memory_space<vmem>>, %arg4: memref<64x16xf32, #tpu.memory_space<vmem>>, %arg5: memref<32x128xbf16, #tpu.memory_space<vmem>>, %arg6: memref<8x128xf32, #tpu.memory_space<vmem>>, %arg7: memref<8x32xf32, #tpu.memory_space<vmem>>) attributes {dimension_semantics = [#tpu.dimension_semantics<parallel>], iteration_bounds = array<i64: 1>, scalar_prefetch = 1 : i64, scratch_operands = 1 : i64, tpu.core_type = #tpu.core_type<tc>, window_params = [{transform_indices = @transform_0, window_bounds = array<i64: 8, 16>}, {transform_indices = @transform_1, window_bounds = array<i64: 8, 10>}, {pipeline_mode = #tpu.pipeline_mode<synchronous>, transform_indices = @transform_2, window_bounds = array<i64: 64, 16>}, {pipeline_mode = #tpu.pipeline_mode<synchronous>, transform_indices = @transform_3, window_bounds = array<i64: 32, 128>}, {transform_indices = @transform_4, window_bounds = array<i64: 8, 128>}]} {
    %c0 = arith.constant 0 : index
    %c0_0 = arith.constant 0 : index
    %0 = vector.load %arg2[%c0, %c0_0] : memref<8x16xf32, #tpu.memory_space<vmem>>, vector<8x16xf32>
    %c0_1 = arith.constant 0 : index
    %c0_2 = arith.constant 0 : index
    %1 = vector.load %arg7[%c0_1, %c0_2] : memref<8x32xf32, #tpu.memory_space<vmem>>, vector<8x16xf32>
    tpu.vector_store %arg7[%c0_1, %c0_2], %0 {strides = array<i32>} : memref<8x32xf32, #tpu.memory_space<vmem>>, vector<8x16xf32>,
    %c0_i32 = arith.constant 0 : i32
    %c8_i32 = arith.constant 8 : i32
    %2 = arith.addi %c0_i32, %c8_i32 : i32
    %c1_i32 = arith.constant 1 : i32
    scf.for %arg8 = %c0_i32 to %2 step %c1_i32  : i32 {
      %c8_i32_11 = arith.constant 8 : i32
      %10 = arith.muli %arg0, %c8_i32_11 : i32
      %11 = arith.addi %10, %arg8 : i32
      %c10_i32 = arith.constant 10 : i32
      %12 = arith.muli %11, %c10_i32 : i32
      %13 = arith.index_cast %arg8 : i32 to index
      %c0_12 = arith.constant 0 : index
      %14 = vector.load %arg3[%13, %c0_12] : memref<8x10xf32, #tpu.memory_space<vmem>>, vector<1x10xf32>
      %cst_13 = arith.constant 0.000000e+00 : f32
      %15 = vector.broadcast %cst_13 : f32 to vector<1x16xf32>
      %c0_i32_14 = arith.constant 0 : i32
      %16 = arith.addi %12, %c0_i32_14 : i32
      %17 = arith.index_cast %16 : i32 to index
      %18 = memref.load %arg1[%17] : memref<80xi32, #tpu.memory_space<smem>>
      %19 = vector.extract_strided_slice %14 {offsets = [0, 0], sizes = [1, 1], strides = [1, 1]} : vector<1x10xf32> to vector<1x1xf32>
      %20 = arith.index_cast %18 : i32 to index
      %c0_15 = arith.constant 0 : index
      %21 = vector.load %arg4[%20, %c0_15] : memref<64x16xf32, #tpu.memory_space<vmem>>, vector<1x16xf32>
      %22 = vector.broadcast %19 : vector<1x1xf32> to vector<1x16xf32>
      %23 = arith.mulf %22, %21 : vector<1x16xf32>
      %24 = arith.addf %15, %23 : vector<1x16xf32>
      %c1_i32_16 = arith.constant 1 : i32
      %25 = arith.addi %12, %c1_i32_16 : i32
      %26 = arith.index_cast %25 : i32 to index
      %27 = memref.load %arg1[%26] : memref<80xi32, #tpu.memory_space<smem>>
      %28 = vector.extract_strided_slice %14 {offsets = [0, 1], sizes = [1, 1], strides = [1, 1]} : vector<1x10xf32> to vector<1x1xf32>
      %29 = arith.index_cast %27 : i32 to index
      %c0_17 = arith.constant 0 : index
      %30 = vector.load %arg4[%29, %c0_17] : memref<64x16xf32, #tpu.memory_space<vmem>>, vector<1x16xf32>
      %31 = vector.broadcast %28 : vector<1x1xf32> to vector<1x16xf32>
      %32 = arith.mulf %31, %30 : vector<1x16xf32>
      %33 = arith.addf %24, %32 : vector<1x16xf32>
      %c2_i32 = arith.constant 2 : i32
      %34 = arith.addi %12, %c2_i32 : i32
      %35 = arith.index_cast %34 : i32 to index
      %36 = memref.load %arg1[%35] : memref<80xi32, #tpu.memory_space<smem>>
      %37 = vector.extract_strided_slice %14 {offsets = [0, 2], sizes = [1, 1], strides = [1, 1]} : vector<1x10xf32> to vector<1x1xf32>
      %38 = arith.index_cast %36 : i32 to index
      %c0_18 = arith.constant 0 : index
      %39 = vector.load %arg4[%38, %c0_18] : memref<64x16xf32, #tpu.memory_space<vmem>>, vector<1x16xf32>
      %40 = vector.broadcast %37 : vector<1x1xf32> to vector<1x16xf32>
      %41 = arith.mulf %40, %39 : vector<1x16xf32>
      %42 = arith.addf %33, %41 : vector<1x16xf32>
      %c3_i32 = arith.constant 3 : i32
      %43 = arith.addi %12, %c3_i32 : i32
      %44 = arith.index_cast %43 : i32 to index
      %45 = memref.load %arg1[%44] : memref<80xi32, #tpu.memory_space<smem>>
      %46 = vector.extract_strided_slice %14 {offsets = [0, 3], sizes = [1, 1], strides = [1, 1]} : vector<1x10xf32> to vector<1x1xf32>
      %47 = arith.index_cast %45 : i32 to index
      %c0_19 = arith.constant 0 : index
      %48 = vector.load %arg4[%47, %c0_19] : memref<64x16xf32, #tpu.memory_space<vmem>>, vector<1x16xf32>
      %49 = vector.broadcast %46 : vector<1x1xf32> to vector<1x16xf32>
      %50 = arith.mulf %49, %48 : vector<1x16xf32>
      %51 = arith.addf %42, %50 : vector<1x16xf32>
      %c4_i32 = arith.constant 4 : i32
      %52 = arith.addi %12, %c4_i32 : i32
      %53 = arith.index_cast %52 : i32 to index
      %54 = memref.load %arg1[%53] : memref<80xi32, #tpu.memory_space<smem>>
      %55 = vector.extract_strided_slice %14 {offsets = [0, 4], sizes = [1, 1], strides = [1, 1]} : vector<1x10xf32> to vector<1x1xf32>
      %56 = arith.index_cast %54 : i32 to index
      %c0_20 = arith.constant 0 : index
      %57 = vector.load %arg4[%56, %c0_20] : memref<64x16xf32, #tpu.memory_space<vmem>>, vector<1x16xf32>
      %58 = vector.broadcast %55 : vector<1x1xf32> to vector<1x16xf32>
      %59 = arith.mulf %58, %57 : vector<1x16xf32>
      %60 = arith.addf %51, %59 : vector<1x16xf32>
      %c5_i32 = arith.constant 5 : i32
      %61 = arith.addi %12, %c5_i32 : i32
      %62 = arith.index_cast %61 : i32 to index
      %63 = memref.load %arg1[%62] : memref<80xi32, #tpu.memory_space<smem>>
      %64 = vector.extract_strided_slice %14 {offsets = [0, 5], sizes = [1, 1], strides = [1, 1]} : vector<1x10xf32> to vector<1x1xf32>
      %65 = arith.index_cast %63 : i32 to index
      %c0_21 = arith.constant 0 : index
      %66 = vector.load %arg4[%65, %c0_21] : memref<64x16xf32, #tpu.memory_space<vmem>>, vector<1x16xf32>
      %67 = vector.broadcast %64 : vector<1x1xf32> to vector<1x16xf32>
      %68 = arith.mulf %67, %66 : vector<1x16xf32>
      %69 = arith.addf %60, %68 : vector<1x16xf32>
      %c6_i32 = arith.constant 6 : i32
      %70 = arith.addi %12, %c6_i32 : i32
      %71 = arith.index_cast %70 : i32 to index
      %72 = memref.load %arg1[%71] : memref<80xi32, #tpu.memory_space<smem>>
      %73 = vector.extract_strided_slice %14 {offsets = [0, 6], sizes = [1, 1], strides = [1, 1]} : vector<1x10xf32> to vector<1x1xf32>
      %74 = arith.index_cast %72 : i32 to index
      %c0_22 = arith.constant 0 : index
      %75 = vector.load %arg4[%74, %c0_22] : memref<64x16xf32, #tpu.memory_space<vmem>>, vector<1x16xf32>
      %76 = vector.broadcast %73 : vector<1x1xf32> to vector<1x16xf32>
      %77 = arith.mulf %76, %75 : vector<1x16xf32>
      %78 = arith.addf %69, %77 : vector<1x16xf32>
      %c7_i32 = arith.constant 7 : i32
      %79 = arith.addi %12, %c7_i32 : i32
      %80 = arith.index_cast %79 : i32 to index
      %81 = memref.load %arg1[%80] : memref<80xi32, #tpu.memory_space<smem>>
      %82 = vector.extract_strided_slice %14 {offsets = [0, 7], sizes = [1, 1], strides = [1, 1]} : vector<1x10xf32> to vector<1x1xf32>
      %83 = arith.index_cast %81 : i32 to index
      %c0_23 = arith.constant 0 : index
      %84 = vector.load %arg4[%83, %c0_23] : memref<64x16xf32, #tpu.memory_space<vmem>>, vector<1x16xf32>
      %85 = vector.broadcast %82 : vector<1x1xf32> to vector<1x16xf32>
      %86 = arith.mulf %85, %84 : vector<1x16xf32>
      %87 = arith.addf %78, %86 : vector<1x16xf32>
      %c8_i32_24 = arith.constant 8 : i32
      %88 = arith.addi %12, %c8_i32_24 : i32
      %89 = arith.index_cast %88 : i32 to index
      %90 = memref.load %arg1[%89] : memref<80xi32, #tpu.memory_space<smem>>
      %91 = vector.extract_strided_slice %14 {offsets = [0, 8], sizes = [1, 1], strides = [1, 1]} : vector<1x10xf32> to vector<1x1xf32>
      %92 = arith.index_cast %90 : i32 to index
      %c0_25 = arith.constant 0 : index
      %93 = vector.load %arg4[%92, %c0_25] : memref<64x16xf32, #tpu.memory_space<vmem>>, vector<1x16xf32>
      %94 = vector.broadcast %91 : vector<1x1xf32> to vector<1x16xf32>
      %95 = arith.mulf %94, %93 : vector<1x16xf32>
      %96 = arith.addf %87, %95 : vector<1x16xf32>
      %c9_i32 = arith.constant 9 : i32
      %97 = arith.addi %12, %c9_i32 : i32
      %98 = arith.index_cast %97 : i32 to index
      %99 = memref.load %arg1[%98] : memref<80xi32, #tpu.memory_space<smem>>
      %100 = vector.extract_strided_slice %14 {offsets = [0, 9], sizes = [1, 1], strides = [1, 1]} : vector<1x10xf32> to vector<1x1xf32>
      %101 = arith.index_cast %99 : i32 to index
      %c0_26 = arith.constant 0 : index
      %102 = vector.load %arg4[%101, %c0_26] : memref<64x16xf32, #tpu.memory_space<vmem>>, vector<1x16xf32>
      %103 = vector.broadcast %100 : vector<1x1xf32> to vector<1x16xf32>
      %104 = arith.mulf %103, %102 : vector<1x16xf32>
      %105 = arith.addf %96, %104 : vector<1x16xf32>
      %106 = arith.index_cast %arg8 : i32 to index
      %c16 = arith.constant 16 : index
      %107 = vector.load %arg7[%106, %c16] : memref<8x32xf32, #tpu.memory_space<vmem>>, vector<1x16xf32>
      tpu.vector_store %arg7[%106, %c16], %105 {strides = array<i32>} : memref<8x32xf32, #tpu.memory_space<vmem>>, vector<1x16xf32>,
    }
    %c8_i32_3 = arith.constant 8 : i32
    %c0_4 = arith.constant 0 : index
    %c0_5 = arith.constant 0 : index
    %3 = vector.load %arg7[%c0_4, %c0_5] : memref<8x32xf32, #tpu.memory_space<vmem>>, vector<8x32xf32>
    %4 = arith.truncf %3 : vector<8x32xf32> to vector<8x32xbf16>
    %c0_6 = arith.constant 0 : index
    %c0_7 = arith.constant 0 : index
    %5 = vector.load %arg5[%c0_6, %c0_7] : memref<32x128xbf16, #tpu.memory_space<vmem>>, vector<32x128xbf16>
    %cst = arith.constant dense<0.000000e+00> : vector<8x128xf32>
    %6 = tpu.matmul %4, %5, %cst {dimension_numbers = #tpu.dot_dimension_numbers<[1], [0], [0], [1], [0, 0, 1, 1], [], []>} : vector<8x32xbf16>, vector<32x128xbf16>, vector<8x128xf32> -> vector<8x128xf32>
    %cst_8 = arith.constant 0.000000e+00 : f32
    %7 = vector.broadcast %cst_8 : f32 to vector<8x128xf32>
    %8 = arith.maximumf %6, %7 : vector<8x128xf32>
    %c0_9 = arith.constant 0 : index
    %c0_10 = arith.constant 0 : index
    %9 = vector.load %arg6[%c0_9, %c0_10] : memref<8x128xf32, #tpu.memory_space<vmem>>, vector<8x128xf32>
    tpu.vector_store %arg6[%c0_9, %c0_10], %8 {strides = array<i32>} : memref<8x128xf32, #tpu.memory_space<vmem>>, vector<8x128xf32>,
    return
  }
  func.func @transform_0(%arg0: i32, %arg1: memref<80xi32, #tpu.memory_space<smem>>) -> (i32, i32) {
    %c0_i32 = arith.constant 0 : i32
    %c0_i32_0 = arith.constant 0 : i32
    return %arg0, %c0_i32 : i32, i32
  }
  func.func @transform_1(%arg0: i32, %arg1: memref<80xi32, #tpu.memory_space<smem>>) -> (i32, i32) {
    %c0_i32 = arith.constant 0 : i32
    %c0_i32_0 = arith.constant 0 : i32
    return %arg0, %c0_i32 : i32, i32
  }
  func.func @transform_2(%arg0: i32, %arg1: memref<80xi32, #tpu.memory_space<smem>>) -> (i32, i32) {
    %c0_i32 = arith.constant 0 : i32
    %c0_i32_0 = arith.constant 0 : i32
    %c0_i32_1 = arith.constant 0 : i32
    return %c0_i32, %c0_i32_0 : i32, i32
  }
  func.func @transform_3(%arg0: i32, %arg1: memref<80xi32, #tpu.memory_space<smem>>) -> (i32, i32) {
    %c0_i32 = arith.constant 0 : i32
    %c0_i32_0 = arith.constant 0 : i32
    %c0_i32_1 = arith.constant 0 : i32
    return %c0_i32, %c0_i32_0 : i32, i32
  }
  func.func @transform_4(%arg0: i32, %arg1: memref<80xi32, #tpu.memory_space<smem>>) -> (i32, i32) {
    %c0_i32 = arith.constant 0 : i32
    %c0_i32_0 = arith.constant 0 : i32
    return %arg0, %c0_i32 : i32, i32
  }
}

</mosaic_0001>

<llo_original>
// kernel: tpu_custom_call.1
$region0: #{tpu_custom_call.1}
  #allocation0 [shape = 'u32[]', space=smem, size = 0x4, offset = 0x4, fixed_abs, tag = 'smem constant byte address 0x4 - core index']
  #allocation1 [shape = 'u32[144,128]{1,0:T(1,128)}', space=vmem, size = 0x12000, scoped, tag = 'internal scratch']
  #allocation2 [shape = 'f32[8,32]{1,0:T(8,128)}', space=vmem, size = 0x1000, scoped, tag = 'scratch operand']
  #allocation3 [shape = 's32[1]{0}', space=sflag, size = 0x4, scoped, tag = 'scoped memory for tpu_custom_call.1']
  #allocation4 [shape = 'u8[512]{0}', space=smem, size = 0x200, scoped, tag = 'prefetched SMEM operand 0']
  %s0 = inlined_call_operand.vmem [shape: s32[80], index: 0, kind: input, shape index: {}]
  %s1 = inlined_call_operand.vmem [shape: f32[8,16], index: 1, kind: input, shape index: {}]
  %s2 = inlined_call_operand.vmem [shape: f32[8,10], index: 2, kind: input, shape index: {}]
  %s3 = inlined_call_operand.vmem [shape: f32[64,16], index: 3, kind: input, shape index: {}]
  %s4 = inlined_call_operand.vmem [shape: bf16[32,128], index: 4, kind: input, shape index: {}]
  %s5 = inlined_call_operand.hbm [shape: f32[8,128], index: 5, kind: output, shape index: {}]
  %s6 = sld [smem:[#allocation0]]
  $region33: #{tpu_custom_call.1} parent=0
    _
  %s8 = ssub.s32 1, %s6
  %s9 = scalar_select 0, %s8, %s6
  %s10 = sshll.u32 %s0, 4
  %s11 = int_to_ptr.vmem [resolvable:$true] %s10
  %13 = dma.vmem_to_smem %s11, 16, [#allocation4], [#allocation3]
  %14 = dma.done [#allocation3], 16
  %15 = sfence
  $region1: #{tpu_custom_call.1} parent=0
    #allocation5 [shape = 'u8[4096]{0}', space=vmem, size = 0x1000, scoped, tag = 'output window, operand 0, single buffered']
    #allocation6 [shape = 's32[1]{0}', space=sflag, size = 0x4, scoped, tag = 'scoped memory for tpu_custom_call.1']
    %16 = vsyncpa [#allocation6], 0
    // Predicated region
    $region2: #{tpu_custom_call.1} parent=1 // pred_check
      _
    $region3: #{tpu_custom_call.1} parent=1 // pred_check_branch
      %18 = sbr.rel (0) target = $region5
    $region4: #{tpu_custom_call.1} parent=1 // pred_region
      _
    $region5: #{tpu_custom_call.1} parent=1 // pred_fallthru
      _
    // Predicated region
    $region6: #{tpu_custom_call.1} parent=1 // pred_check
      _
    $region7: #{tpu_custom_call.1} parent=1 // pred_check_branch
      %20 = sbr.rel (0) target = $region9
    $region8: #{tpu_custom_call.1} parent=1 // pred_region
      _
    $region9: #{tpu_custom_call.1} parent=1 // pred_fallthru
      _
    // Predicated region
    $region10: #{tpu_custom_call.1} parent=1 // pred_check
      _
    $region11: #{tpu_custom_call.1} parent=1 // pred_check_branch
      %22 = sbr.rel (0) target = $region13
    $region12: #{tpu_custom_call.1} parent=1 // pred_region
      _
    $region13: #{tpu_custom_call.1} parent=1 // pred_fallthru
      _
    // Predicated region
    $region14: #{tpu_custom_call.1} parent=1 // pred_check
      _
    $region15: #{tpu_custom_call.1} parent=1 // pred_check_branch
      %24 = sbr.rel (0) target = $region17
    $region16: #{tpu_custom_call.1} parent=1 // pred_region
      _
    $region17: #{tpu_custom_call.1} parent=1 // pred_fallthru
      _
    %v26 = vld [vmem:[%s1] sm:$0xff]
    %vm27 = vcmask 130048
    %28 = vst.msk [vmem:[#allocation2] sm:$0xff] %vm27, %v26
    loop: start=0, step=1, limit=8
    $region18: #{tpu_custom_call.1} parent=1 // loop_pre_header
      _
    $region19: #{tpu_custom_call.1} parent=1 // loop_header
      %s30 = sphi 0, %s34
      %p31 = scmp.ge.s32.totalorder %s30, 8
    $region20: #{tpu_custom_call.1} parent=1 // loop_header_branch
      %33 = sbr.rel (%p31) target = $region24
    $region21: #{tpu_custom_call.1} parent=1 // loop_body
      %s35 = smul.u32 0, 8
      %s36 = sadd.s32 %s35, %s30
      %s37 = smul.u32 %s36, 10
      %s38 = scalar_lea.vmem %s2, %s30
      %v39 = vld [vmem:[%s38] sm:$0x1]
      %s40 = sld [smem:[#allocation4 + %s37]]
      %s41 = scalar_lea.vmem %s3, %s40
      %v42 = vld [vmem:[%s41] sm:$0x1]
      %44 = vset.pattern.permute.xlu0 0
      %45 = vperm.xlu0 %44, %v39
      %v46 = vpop.permute.xlu0 %45
      %v48 = vmul.f32 %v46, %v42
      %v49 = vadd.f32 %v48, 0.0
      %s50 = sadd.s32 %s37, 1
      %s51 = sld [smem:[#allocation4 + %s50]]
      %s52 = scalar_lea.vmem %s3, %s51
      %v53 = vld [vmem:[%s52] sm:$0x1]
      %54 = vset.pattern.permute.xlu0 1
      %55 = vperm.xlu0 %54, %v39
      %v56 = vpop.permute.xlu0 %55
      %v58 = vmul.f32 %v56, %v53
      %v59 = vadd.f32 %v49, %v58
      %s60 = sadd.s32 %s37, 2
      %s61 = sld [smem:[#allocation4 + %s60]]
      %s62 = scalar_lea.vmem %s3, %s61
      %v63 = vld [vmem:[%s62] sm:$0x1]
      %64 = vset.pattern.permute.xlu0 2
      %65 = vperm.xlu0 %64, %v39
      %v66 = vpop.permute.xlu0 %65
      %v68 = vmul.f32 %v66, %v63
      %v69 = vadd.f32 %v59, %v68
      %s70 = sadd.s32 %s37, 3
      %s71 = sld [smem:[#allocation4 + %s70]]
      %s72 = scalar_lea.vmem %s3, %s71
      %v73 = vld [vmem:[%s72] sm:$0x1]
      %74 = vset.pattern.permute.xlu0 3
      %75 = vperm.xlu0 %74, %v39
      %v76 = vpop.permute.xlu0 %75
      %v78 = vmul.f32 %v76, %v73
      %v79 = vadd.f32 %v69, %v78
      %s80 = sadd.s32 %s37, 4
      %s81 = sld [smem:[#allocation4 + %s80]]
      %s82 = scalar_lea.vmem %s3, %s81
      %v83 = vld [vmem:[%s82] sm:$0x1]
      %84 = vset.pattern.permute.xlu0 4
      %85 = vperm.xlu0 %84, %v39
      %v86 = vpop.permute.xlu0 %85
      %v88 = vmul.f32 %v86, %v83
      %v89 = vadd.f32 %v79, %v88
      %s90 = sadd.s32 %s37, 5
      %s91 = sld [smem:[#allocation4 + %s90]]
      %s92 = scalar_lea.vmem %s3, %s91
      %v93 = vld [vmem:[%s92] sm:$0x1]
      %94 = vset.pattern.permute.xlu0 5
      %95 = vperm.xlu0 %94, %v39
      %v96 = vpop.permute.xlu0 %95
      %v98 = vmul.f32 %v96, %v93
      %v99 = vadd.f32 %v89, %v98
      %s100 = sadd.s32 %s37, 6
      %s101 = sld [smem:[#allocation4 + %s100]]
      %s102 = scalar_lea.vmem %s3, %s101
      %v103 = vld [vmem:[%s102] sm:$0x1]
      %104 = vset.pattern.permute.xlu0 6
      %105 = vperm.xlu0 %104, %v39
      %v106 = vpop.permute.xlu0 %105
      %v108 = vmul.f32 %v106, %v103
      %v109 = vadd.f32 %v99, %v108
      %s110 = sadd.s32 %s37, 7
      %s111 = sld [smem:[#allocation4 + %s110]]
      %s112 = scalar_lea.vmem %s3, %s111
      %v113 = vld [vmem:[%s112] sm:$0x1]
      %114 = vset.pattern.permute.xlu0 7
      %115 = vperm.xlu0 %114, %v39
      %v116 = vpop.permute.xlu0 %115
      %v118 = vmul.f32 %v116, %v113
      %v119 = vadd.f32 %v109, %v118
      %s120 = sadd.s32 %s37, 8
      %s121 = sld [smem:[#allocation4 + %s120]]
      %s122 = scalar_lea.vmem %s3, %s121
      %v123 = vld [vmem:[%s122] sm:$0x1]
      %124 = vset.pattern.permute.xlu0 8
      %125 = vperm.xlu0 %124, %v39
      %v126 = vpop.permute.xlu0 %125
      %v128 = vmul.f32 %v126, %v123
      %v129 = vadd.f32 %v119, %v128
      %s130 = sadd.s32 %s37, 9
      %s131 = sld [smem:[#allocation4 + %s130]]
      %s132 = scalar_lea.vmem %s3, %s131
      %v133 = vld [vmem:[%s132] sm:$0x1]
      %134 = vset.pattern.permute.xlu0 9
      %135 = vperm.xlu0 %134, %v39
      %v136 = vpop.permute.xlu0 %135
      %v138 = vmul.f32 %v136, %v133
      %v139 = vadd.f32 %v129, %v138
      %141 = vrot.lane.b32.xlu0 %v139, 16
      %v142 = vpop.permute.xlu0 %141
      %s144 = scalar_lea.vmem [#allocation2], %s30
      %vm145 = vcmask 254080
      %146 = vst.msk [vmem:[%s144] sm:$0x1] %vm145, %v142
    $region22: #{tpu_custom_call.1} parent=1 // loop_footer
      %s34 = sadd.s32 1, %s30
    $region23: #{tpu_custom_call.1} parent=1 // loop_footer_branch
      %29 = sbr.rel target = $region19
    $region24: #{tpu_custom_call.1} parent=1 // loop_exit
      _
    %v147 = vld [vmem:[#allocation2] sm:$0xff]
    %v148 = vpack.c.bf16 %v147, %v147
    %v149 = vld [vmem:[%s4] sm:$0xf]
    %v150 = vld [vmem:[%s4 + $0x4] sm:$0xf]
    %v151 = vld [vmem:[%s4 + $0x8] sm:$0xf]
    %v152 = vld [vmem:[%s4 + $0xc] sm:$0xf]
    %v157 = vunpack.c.l.b16 %v149
    %v158 = vunpack.c.l.b16 %v150
    %v159 = vunpack.c.l.b16 %v151
    %v160 = vunpack.c.l.b16 %v152
    %v161 = vpack.c.b16 %v158, %v157
    %v162 = vpack.c.b16 %v160, %v159
    %vm165 = vcmask 261120
    %v167 = vsel %vm165, %v148, 0
    %169 = vmatprep.subr.bf16.mxu0 0
    %170 = vmatpush1.bf16.msra.mxu0 %v161
    %171 = vmatprep.subr.bf16.mxu0 0
    %172 = vmatpush1.bf16.msra.mxu0 %v162
    %173 = vmatprep.subr.bf16.mxu0 0
    %174 = vmatpush1.bf16.msra.mxu0 0
    %175 = vmatprep.subr.bf16.mxu0 0
    %176 = vmatpush1.bf16.msra.mxu0 0
    %177 = vmatprep.subr.bf16.mxu0 0
    %178 = vmatpush1.bf16.msra.mxu0 0
    %179 = vmatprep.subr.bf16.mxu0 0
    %180 = vmatpush1.bf16.msra.mxu0 0
    %181 = vmatprep.subr.bf16.mxu0 0
    %182 = vmatpush1.bf16.msra.mxu0 0
    %183 = vmatprep.subr.bf16.mxu0 0
    %184 = vmatpush1.bf16.msra.mxu0 0
    %185 = vmatprep.subr.bf16.mxu0 0
    %186 = vmatpush1.bf16.msra.mxu0 0
    %187 = vmatprep.subr.bf16.mxu0 0
    %188 = vmatpush1.bf16.msra.mxu0 0
    %189 = vmatprep.subr.bf16.mxu0 0
    %190 = vmatpush1.bf16.msra.mxu0 0
    %191 = vmatprep.subr.bf16.mxu0 0
    %192 = vmatpush1.bf16.msra.mxu0 0
    %193 = vmatprep.subr.bf16.mxu0 0
    %194 = vmatpush1.bf16.msra.mxu0 0
    %195 = vmatprep.subr.bf16.mxu0 0
    %196 = vmatpush1.bf16.msra.mxu0 0
    %197 = vmatprep.subr.bf16.mxu0 0
    %198 = vmatpush1.bf16.msra.mxu0 0
    %199 = vmatprep.subr.bf16.mxu0 0
    %200 = vmatpush1.bf16.msra.mxu0 0
    %201 = vmatprep.mubr.bf16.mxu0 0
    %202 = vmatmul.mubr.bf16.gmra.mrb[0].mxu0 %v167
    %v203 = vpop.f32.mrb[0].mxu0
    %v204 = vadd.f32 0.0, %v203
    %v205 = vpop.f32.mrb[0].mxu0
    %v206 = vpop.f32.mrb[0].mxu0
    %v207 = vpop.f32.mrb[0].mxu0
    %208 = vdwg.mxu0
    %v209 = vmax.f32 %v204, 0.0
    %210 = vst [vmem:[#allocation5] sm:$0xff] %v209
    // Predicated region
    $region25: #{tpu_custom_call.1} parent=1 // pred_check
      _
    $region26: #{tpu_custom_call.1} parent=1 // pred_check_branch
      %212 = sbr.rel (0) target = $region28
    $region27: #{tpu_custom_call.1} parent=1 // pred_region
      %s214 = ssub.s32 128, 128
      %215 = vsyncadd [#allocation6], %s214
      %s217 = sshll.u32 [#allocation5], 4
      %s218 = int_to_ptr.vmem [resolvable:$true] %s217
      %220 = dma.vmem_to_hbm [thread:$0]  %s218, 128, %s5, [#allocation6]
    $region28: #{tpu_custom_call.1} parent=1 // pred_fallthru
      _
    // Predicated region
    $region29: #{tpu_custom_call.1} parent=1 // pred_check
      _
    $region30: #{tpu_custom_call.1} parent=1 // pred_check_branch
      %222 = sbr.rel (0) target = $region32
    $region31: #{tpu_custom_call.1} parent=1 // pred_region
      %223 = dma.done [#allocation6], 128
    $region32: #{tpu_custom_call.1} parent=1 // pred_fallthru
      _
    %224 = vsyncpa [#allocation6], 1

</llo_original>
